<compile_context>
chip_gen: v7x
topology: tpu7x:2x2x1
jax: 0.10.0
libtpu: 0.0.40
codegen_flags: <defaults>
</compile_context>

<pallas_src>
import jax
import jax.numpy as jnp
from jax.experimental import pallas as pl
from jax.experimental.pallas import tpu as pltpu


_LN_EPS = 1e-12


def _gelu(x):
    # "gelu_new" (tanh approximation) matching the reference below.
    c = jnp.sqrt(2.0 / jnp.pi).astype(x.dtype)
    return 0.5 * x * (1.0 + jnp.tanh(c * (x + 0.044715 * x * x * x)))


def _round_up(x, m):
    return (x + m - 1) // m * m


def _pick_vmem_limit():
    """Generation-aware scoped-VMEM limit (conservative fallback)."""
    default = 48 * 1024 * 1024
    try:
        cap = pltpu.get_tpu_info().vmem_capacity_bytes
    except Exception:
        return default
    if cap >= 128 * 1024 * 1024:          # v5e / v6e: plenty of headroom
        return 100 * 1024 * 1024
    # v7x-class (64 MiB physical): leave headroom for compiler scratch.
    return min(default, max(cap - 12 * 1024 * 1024, 32 * 1024 * 1024))


# --------------------------------------------------------------------------- #
# Kernels
# --------------------------------------------------------------------------- #
def _transform_kernel(seq_ref, dw_ref, db_ref, g_ref, b_ref,
                      pooled_ref, srw_ref, srb_ref,
                      h_ref, rel_ref):
    # dense -> GELU -> LayerNorm for one row block (bf16 in, f32 math, bf16 out).
    x = seq_ref[...]                                               # [TM, H] bf16
    h = jax.lax.dot_general(                                       # x @ dense_w.T
        x, dw_ref[...],
        dimension_numbers=(((1,), (1,)), ((), ())),
        preferred_element_type=jnp.float32,
    ) + db_ref[...]
    h = _gelu(h)
    # LayerNorm(eps=1e-12), biased variance (matches torch.nn.LayerNorm).
    # Padded (all-zero) rows are benign: rsqrt(0 + eps) is finite; they are
    # sliced off in the wrapper.
    mean = jnp.mean(h, axis=-1, keepdims=True)
    var = jnp.mean(jnp.square(h - mean), axis=-1, keepdims=True)
    h = (h - mean) * jax.lax.rsqrt(var + _LN_EPS)
    h = h * g_ref[...] + b_ref[...]
    h_ref[...] = h.astype(h_ref.dtype)

    # Tiny seq_relationship head (recomputed per row block; negligible work,
    # same output block every iteration).
    rel_ref[...] = jax.lax.dot_general(
        pooled_ref[...], srw_ref[...],                             # p @ sr_w.T
        dimension_numbers=(((1,), (1,)), ((), ())),
        preferred_element_type=jnp.float32,
    ) + srb_ref[...]


def _decoder_kernel(h_ref, emb_ref, lmb_ref, scores_ref):
    # Pure tied-embedding bias-GEMM over one (row, vocab) tile.
    scores_ref[...] = (jax.lax.dot_general(
        h_ref[...], emb_ref[...],                                  # h @ emb.T
        dimension_numbers=(((1,), (1,)), ((), ())),
        preferred_element_type=jnp.float32,
    ) + lmb_ref[...]).astype(scores_ref.dtype)


# --------------------------------------------------------------------------- #
# Wrapper
# --------------------------------------------------------------------------- #
def lxmert_pretraining_heads(sequence_output, pooled_output, params,
                             *, tm=1024, tn=2048, out_dtype=jnp.bfloat16):
    """sequence_output: [B, S, H]; pooled_output: [B, H].

    Returns (prediction_scores [B, S, V] in `out_dtype`, seq_relationship [B, 2] f32).
    NOTE: downstream masked-LM softmax/CE should upcast bf16 logits to f32.
    """
    B, S, H = sequence_output.shape
    V = params["emb_w"].shape[0]
    T = B * S

    # Tile sizes (clipped for small shapes) and padded extents.
    TM = min(tm, _round_up(T, 8))
    TN = min(tn, _round_up(V, 128))
    Tp = _round_up(T, TM)
    Vp = _round_up(V, TN)

    # bf16 inputs / weights for the MXU (f32 accumulation inside the kernels).
    seq2d = sequence_output.reshape(T, H).astype(jnp.bfloat16)
    if Tp != T:
        seq2d = jnp.pad(seq2d, ((0, Tp - T), (0, 0)))

    dense_w = params["dense_w"].astype(jnp.bfloat16)               # [H, H]
    emb_w = params["emb_w"].astype(jnp.bfloat16)                   # [V, H]
    lm_bias = params["lm_bias"].reshape(1, V).astype(jnp.float32)
    if Vp != V:
        emb_w = jnp.pad(emb_w, ((0, Vp - V), (0, 0)))
        lm_bias = jnp.pad(lm_bias, ((0, 0), (0, Vp - V)))

    dense_b = params["dense_b"].reshape(1, H).astype(jnp.float32)
    ln_gamma = params["ln_gamma"].reshape(1, H).astype(jnp.float32)
    ln_beta = params["ln_beta"].reshape(1, H).astype(jnp.float32)
    sr_w = params["sr_w"].astype(jnp.float32)                      # [2, H]
    sr_b = params["sr_b"].reshape(1, 2).astype(jnp.float32)

    vmem_limit = _pick_vmem_limit()
    out_bytes = jnp.dtype(out_dtype).itemsize

    # ---- Stage 1: transform (+ folded seq_relationship head) ---------------
    n_row_blocks = Tp // TM
    transform_cost = pl.CostEstimate(
        flops=2 * Tp * H * H + 4 * B * H,
        transcendentals=Tp * H,
        bytes_accessed=Tp * H * 2 * 2 + H * H * 2 + 6 * H * 4 + B * H * 4,
    )
    h_hidden, rel = pl.pallas_call(
        _transform_kernel,
        out_shape=(jax.ShapeDtypeStruct((Tp, H), jnp.bfloat16),
                   jax.ShapeDtypeStruct((B, 2), jnp.float32)),
        grid_spec=pltpu.PrefetchScalarGridSpec(
            num_scalar_prefetch=0,
            grid=(n_row_blocks,),
            in_specs=[
                pl.BlockSpec((TM, H), lambda i: (i, 0)),   # sequence rows (bf16)
                pl.BlockSpec((H, H), lambda i: (0, 0)),    # dense_w (resident)
                pl.BlockSpec((1, H), lambda i: (0, 0)),    # dense_b
                pl.BlockSpec((1, H), lambda i: (0, 0)),    # ln_gamma
                pl.BlockSpec((1, H), lambda i: (0, 0)),    # ln_beta
                pl.BlockSpec((B, H), lambda i: (0, 0)),    # pooled_output
                pl.BlockSpec((2, H), lambda i: (0, 0)),    # sr_w
                pl.BlockSpec((1, 2), lambda i: (0, 0)),    # sr_b
            ],
            out_specs=[
                pl.BlockSpec((TM, H), lambda i: (i, 0)),   # h (bf16, to HBM)
                pl.BlockSpec((B, 2), lambda i: (0, 0)),    # seq_relationship
            ],
        ),
        compiler_params=pltpu.CompilerParams(
            dimension_semantics=("arbitrary",),
            vmem_limit_bytes=vmem_limit,
        ),
        cost_estimate=transform_cost,
    )(seq2d, dense_w, dense_b, ln_gamma, ln_beta,
      pooled_output.astype(jnp.float32), sr_w, sr_b)

    # ---- Stage 2: tied-embedding decoder (pure bias-GEMM) ------------------
    grid = (Tp // TM, Vp // TN)
    decoder_cost = pl.CostEstimate(
        flops=2 * Tp * H * Vp,
        transcendentals=0,
        bytes_accessed=(Tp * H * 2                      # h read once per row block
                        + grid[0] * Vp * H * 2          # emb re-streamed per row block
                        + Tp * Vp * out_bytes           # logit writeback
                        + Vp * 4),
    )
    scores = pl.pallas_call(
        _decoder_kernel,
        out_shape=jax.ShapeDtypeStruct((Tp, Vp), out_dtype),
        grid_spec=pltpu.PrefetchScalarGridSpec(
            num_scalar_prefetch=0,
            grid=grid,
            in_specs=[
                pl.BlockSpec((TM, H), lambda i, j: (i, 0)),   # h row block (bf16)
                pl.BlockSpec((TN, H), lambda i, j: (j, 0)),   # emb vocab tile (bf16)
                pl.BlockSpec((1, TN), lambda i, j: (0, j)),   # lm_bias vocab tile
            ],
            out_specs=pl.BlockSpec((TM, TN), lambda i, j: (i, j)),
        ),
        compiler_params=pltpu.CompilerParams(
            dimension_semantics=("parallel", "arbitrary"),
            vmem_limit_bytes=vmem_limit,
        ),
        cost_estimate=decoder_cost,
    )(h_hidden, emb_w, lm_bias)

    scores = scores[:T, :V].reshape(B, S, V)
    return scores, rel


# --------------------------------------------------------------------------- #
# Reference, params, test
# --------------------------------------------------------------------------- #
def _reference(sequence_output, pooled_output, params):
    """Plain-JAX (f32) reference mirroring the PyTorch module."""
    B, S, H = sequence_output.shape
    x = sequence_output.reshape(B * S, H)
    h = x @ params["dense_w"].T + params["dense_b"]
    h = _gelu(h)
    mean = jnp.mean(h, axis=-1, keepdims=True)
    var = jnp.mean(jnp.square(h - mean), axis=-1, keepdims=True)
    h = (h - mean) * jax.lax.rsqrt(var + _LN_EPS)
    h = h * params["ln_gamma"] + params["ln_beta"]
    scores = h @ params["emb_w"].T + params["lm_bias"]
    rel = pooled_output @ params["sr_w"].T + params["sr_b"]
    return scores.reshape(B, S, -1), rel


def _init_params(key, hidden, vocab):
    ks = jax.random.split(key, 8)
    return {
        "dense_w": 0.02 * jax.random.normal(ks[0], (hidden, hidden), jnp.float32),
        "dense_b": 0.02 * jax.random.normal(ks[1], (hidden,), jnp.float32),
        "ln_gamma": 1.0 + 0.1 * jax.random.normal(ks[2], (hidden,), jnp.float32),
        "ln_beta": 0.1 * jax.random.normal(ks[3], (hidden,), jnp.float32),
        "emb_w": 0.02 * jax.random.normal(ks[4], (vocab, hidden), jnp.float32),
        "lm_bias": jnp.zeros((vocab,), jnp.float32),  # nn.Parameter(torch.zeros(V))
        "sr_w": 0.02 * jax.random.normal(ks[5], (2, hidden), jnp.float32),
        "sr_b": 0.02 * jax.random.normal(ks[6], (2,), jnp.float32),
    }


def _run_case(key, B, S, H, V, **kw):
    k_seq, k_pool, k_par = jax.random.split(key, 3)
    sequence_output = jax.random.normal(k_seq, (B, S, H), jnp.float32)
    pooled_output = jax.random.normal(k_pool, (B, H), jnp.float32)
    params = _init_params(k_par, H, V)

    scores, rel = lxmert_pretraining_heads(sequence_output, pooled_output,
                                           params, **kw)
    scores = jax.block_until_ready(scores)
    rel = jax.block_until_ready(rel)

    ref_scores, ref_rel = _reference(sequence_output, pooled_output, params)

    assert scores.shape == (B, S, V) and rel.shape == (B, 2)
    assert jnp.allclose(scores.astype(jnp.float32), ref_scores,
                        atol=2e-2, rtol=2e-2)
    assert jnp.allclose(rel, ref_rel, atol=2e-2, rtol=2e-2)


if __name__ == "__main__":
    key = jax.random.PRNGKey(0)
    k1, k2 = jax.random.split(key, 2)

    # Case 1: tiny shapes (single-tile grid).
    _run_case(k1, B=2, S=8, H=64, V=256)

    # Case 2: multi-tile grid with row and vocab padding (T=72 -> Tp=96,
    # V=640 -> Vp=768) to exercise the pipelined reuse + padding paths.
    _run_case(k2, B=2, S=36, H=128, V=640, tm=32, tn=256)

    print("KERNEL_OK")
</pallas_src>

<mosaic_0001>
module attributes {stable_mosaic.version = 11 : i64} {
  func.func @_transform_kernel(%arg0: i32, %arg1: memref<16x64xbf16, #tpu.memory_space<vmem>>, %arg2: memref<64x64xbf16, #tpu.memory_space<vmem>>, %arg3: memref<1x64xf32, #tpu.memory_space<vmem>>, %arg4: memref<1x64xf32, #tpu.memory_space<vmem>>, %arg5: memref<1x64xf32, #tpu.memory_space<vmem>>, %arg6: memref<2x64xf32, #tpu.memory_space<vmem>>, %arg7: memref<2x64xf32, #tpu.memory_space<vmem>>, %arg8: memref<1x2xf32, #tpu.memory_space<vmem>>, %arg9: memref<16x64xbf16, #tpu.memory_space<vmem>>, %arg10: memref<2x2xf32, #tpu.memory_space<vmem>>) attributes {dimension_semantics = [#tpu.dimension_semantics<arbitrary>], iteration_bounds = array<i64: 1>, scalar_prefetch = 0 : i64, scratch_operands = 0 : i64, tpu.core_type = #tpu.core_type<tc>, window_params = [{transform_indices = @transform_0, window_bounds = array<i64: 16, 64>}, {pipeline_mode = #tpu.pipeline_mode<synchronous>, transform_indices = @transform_1, window_bounds = array<i64: 64, 64>}, {pipeline_mode = #tpu.pipeline_mode<synchronous>, transform_indices = @transform_2, window_bounds = array<i64: 1, 64>}, {pipeline_mode = #tpu.pipeline_mode<synchronous>, transform_indices = @transform_3, window_bounds = array<i64: 1, 64>}, {pipeline_mode = #tpu.pipeline_mode<synchronous>, transform_indices = @transform_4, window_bounds = array<i64: 1, 64>}, {pipeline_mode = #tpu.pipeline_mode<synchronous>, transform_indices = @transform_5, window_bounds = array<i64: 2, 64>}, {pipeline_mode = #tpu.pipeline_mode<synchronous>, transform_indices = @transform_6, window_bounds = array<i64: 2, 64>}, {pipeline_mode = #tpu.pipeline_mode<synchronous>, transform_indices = @transform_7, window_bounds = array<i64: 1, 2>}, {transform_indices = @transform_8, window_bounds = array<i64: 16, 64>}, {pipeline_mode = #tpu.pipeline_mode<synchronous>, transform_indices = @transform_9, window_bounds = array<i64: 2, 2>}]} {
    %c0 = arith.constant 0 : index
    %c0_0 = arith.constant 0 : index
    %0 = vector.load %arg1[%c0, %c0_0] : memref<16x64xbf16, #tpu.memory_space<vmem>>, vector<16x64xbf16>
    %c0_1 = arith.constant 0 : index
    %c0_2 = arith.constant 0 : index
    %1 = vector.load %arg2[%c0_1, %c0_2] : memref<64x64xbf16, #tpu.memory_space<vmem>>, vector<64x64xbf16>
    %cst = arith.constant dense<0.000000e+00> : vector<16x64xf32>
    %2 = tpu.matmul %0, %1, %cst {dimension_numbers = #tpu.dot_dimension_numbers<[1], [1], [0], [0], [0, 0, 1, 0], [], []>} : vector<16x64xbf16>, vector<64x64xbf16>, vector<16x64xf32> -> vector<16x64xf32>
    %c0_3 = arith.constant 0 : index
    %c0_4 = arith.constant 0 : index
    %3 = vector.load %arg3[%c0_3, %c0_4] : memref<1x64xf32, #tpu.memory_space<vmem>>, vector<1x64xf32>
    %4 = vector.broadcast %3 : vector<1x64xf32> to vector<16x64xf32>
    %5 = arith.addf %2, %4 : vector<16x64xf32>
    %cst_5 = arith.constant 0.636619746 : f32
    %6 = math.sqrt %cst_5 : f32
    %cst_6 = arith.constant 5.000000e-01 : f32
    %7 = vector.broadcast %cst_6 : f32 to vector<16x64xf32>
    %8 = arith.mulf %7, %5 : vector<16x64xf32>
    %cst_7 = arith.constant 4.471500e-02 : f32
    %9 = vector.broadcast %cst_7 : f32 to vector<16x64xf32>
    %10 = arith.mulf %9, %5 : vector<16x64xf32>
    %11 = arith.mulf %10, %5 : vector<16x64xf32>
    %12 = arith.mulf %11, %5 : vector<16x64xf32>
    %13 = arith.addf %5, %12 : vector<16x64xf32>
    %14 = vector.broadcast %6 : f32 to vector<16x64xf32>
    %15 = arith.mulf %14, %13 : vector<16x64xf32>
    %16 = math.tanh %15 : vector<16x64xf32>
    %cst_8 = arith.constant 1.000000e+00 : f32
    %17 = vector.broadcast %cst_8 : f32 to vector<16x64xf32>
    %18 = arith.addf %17, %16 : vector<16x64xf32>
    %19 = arith.mulf %8, %18 : vector<16x64xf32>
    %cst_9 = arith.constant dense<0.000000e+00> : vector<16xf32>
    %20 = vector.multi_reduction <add>, %19, %cst_9 [1] : vector<16x64xf32> to vector<16xf32>
    %21 = vector.shape_cast %20 : vector<16xf32> to vector<16x1xf32>
    %cst_10 = arith.constant 6.400000e+01 : f32
    %22 = vector.broadcast %cst_10 : f32 to vector<16x1xf32>
    %23 = arith.divf %21, %22 : vector<16x1xf32>
    %24 = vector.broadcast %23 : vector<16x1xf32> to vector<16x64xf32>
    %25 = arith.subf %19, %24 : vector<16x64xf32>
    %26 = arith.mulf %25, %25 : vector<16x64xf32>
    %cst_11 = arith.constant dense<0.000000e+00> : vector<16xf32>
    %27 = vector.multi_reduction <add>, %26, %cst_11 [1] : vector<16x64xf32> to vector<16xf32>
    %28 = vector.shape_cast %27 : vector<16xf32> to vector<16x1xf32>
    %cst_12 = arith.constant 6.400000e+01 : f32
    %29 = vector.broadcast %cst_12 : f32 to vector<16x1xf32>
    %30 = arith.divf %28, %29 : vector<16x1xf32>
    %31 = vector.broadcast %23 : vector<16x1xf32> to vector<16x64xf32>
    %32 = arith.subf %19, %31 : vector<16x64xf32>
    %cst_13 = arith.constant 9.99999996E-13 : f32
    %33 = vector.broadcast %cst_13 : f32 to vector<16x1xf32>
    %34 = arith.addf %30, %33 : vector<16x1xf32>
    %35 = math.rsqrt %34 : vector<16x1xf32>
    %36 = vector.broadcast %35 : vector<16x1xf32> to vector<16x64xf32>
    %37 = arith.mulf %32, %36 : vector<16x64xf32>
    %c0_14 = arith.constant 0 : index
    %c0_15 = arith.constant 0 : index
    %38 = vector.load %arg4[%c0_14, %c0_15] : memref<1x64xf32, #tpu.memory_space<vmem>>, vector<1x64xf32>
    %39 = vector.broadcast %38 : vector<1x64xf32> to vector<16x64xf32>
    %40 = arith.mulf %37, %39 : vector<16x64xf32>
    %c0_16 = arith.constant 0 : index
    %c0_17 = arith.constant 0 : index
    %41 = vector.load %arg5[%c0_16, %c0_17] : memref<1x64xf32, #tpu.memory_space<vmem>>, vector<1x64xf32>
    %42 = vector.broadcast %41 : vector<1x64xf32> to vector<16x64xf32>
    %43 = arith.addf %40, %42 : vector<16x64xf32>
    %44 = arith.truncf %43 : vector<16x64xf32> to vector<16x64xbf16>
    %c0_18 = arith.constant 0 : index
    %c0_19 = arith.constant 0 : index
    %45 = vector.load %arg9[%c0_18, %c0_19] : memref<16x64xbf16, #tpu.memory_space<vmem>>, vector<16x64xbf16>
    tpu.vector_store %arg9[%c0_18, %c0_19], %44 {strides = array<i32>} : memref<16x64xbf16, #tpu.memory_space<vmem>>, vector<16x64xbf16>,
    %c0_20 = arith.constant 0 : index
    %c0_21 = arith.constant 0 : index
    %46 = vector.load %arg6[%c0_20, %c0_21] : memref<2x64xf32, #tpu.memory_space<vmem>>, vector<2x64xf32>
    %c0_22 = arith.constant 0 : index
    %c0_23 = arith.constant 0 : index
    %47 = vector.load %arg7[%c0_22, %c0_23] : memref<2x64xf32, #tpu.memory_space<vmem>>, vector<2x64xf32>
    %cst_24 = arith.constant dense<0.000000e+00> : vector<2x2xf32>
    %48 = tpu.matmul %46, %47, %cst_24 {dimension_numbers = #tpu.dot_dimension_numbers<[1], [1], [0], [0], [0, 0, 1, 0], [], []>} : vector<2x64xf32>, vector<2x64xf32>, vector<2x2xf32> -> vector<2x2xf32>
    %c0_25 = arith.constant 0 : index
    %c0_26 = arith.constant 0 : index
    %49 = vector.load %arg8[%c0_25, %c0_26] : memref<1x2xf32, #tpu.memory_space<vmem>>, vector<1x2xf32>
    %50 = vector.broadcast %49 : vector<1x2xf32> to vector<2x2xf32>
    %51 = arith.addf %48, %50 : vector<2x2xf32>
    %c0_27 = arith.constant 0 : index
    %c0_28 = arith.constant 0 : index
    %52 = vector.load %arg10[%c0_27, %c0_28] : memref<2x2xf32, #tpu.memory_space<vmem>>, vector<2x2xf32>
    tpu.vector_store %arg10[%c0_27, %c0_28], %51 {strides = array<i32>} : memref<2x2xf32, #tpu.memory_space<vmem>>, vector<2x2xf32>,
    return
  }
  func.func @transform_0(%arg0: i32) -> (i32, i32) {
    %c0_i32 = arith.constant 0 : i32
    %c0_i32_0 = arith.constant 0 : i32
    return %arg0, %c0_i32 : i32, i32
  }
  func.func @transform_1(%arg0: i32) -> (i32, i32) {
    %c0_i32 = arith.constant 0 : i32
    %c0_i32_0 = arith.constant 0 : i32
    %c0_i32_1 = arith.constant 0 : i32
    return %c0_i32, %c0_i32_0 : i32, i32
  }
  func.func @transform_2(%arg0: i32) -> (i32, i32) {
    %c0_i32 = arith.constant 0 : i32
    %c0_i32_0 = arith.constant 0 : i32
    %c0_i32_1 = arith.constant 0 : i32
    return %c0_i32, %c0_i32_0 : i32, i32
  }
  func.func @transform_3(%arg0: i32) -> (i32, i32) {
    %c0_i32 = arith.constant 0 : i32
    %c0_i32_0 = arith.constant 0 : i32
    %c0_i32_1 = arith.constant 0 : i32
    return %c0_i32, %c0_i32_0 : i32, i32
  }
  func.func @transform_4(%arg0: i32) -> (i32, i32) {
    %c0_i32 = arith.constant 0 : i32
    %c0_i32_0 = arith.constant 0 : i32
    %c0_i32_1 = arith.constant 0 : i32
    return %c0_i32, %c0_i32_0 : i32, i32
  }
  func.func @transform_5(%arg0: i32) -> (i32, i32) {
    %c0_i32 = arith.constant 0 : i32
    %c0_i32_0 = arith.constant 0 : i32
    %c0_i32_1 = arith.constant 0 : i32
    return %c0_i32, %c0_i32_0 : i32, i32
  }
  func.func @transform_6(%arg0: i32) -> (i32, i32) {
    %c0_i32 = arith.constant 0 : i32
    %c0_i32_0 = arith.constant 0 : i32
    %c0_i32_1 = arith.constant 0 : i32
    return %c0_i32, %c0_i32_0 : i32, i32
  }
  func.func @transform_7(%arg0: i32) -> (i32, i32) {
    %c0_i32 = arith.constant 0 : i32
    %c0_i32_0 = arith.constant 0 : i32
    %c0_i32_1 = arith.constant 0 : i32
    return %c0_i32, %c0_i32_0 : i32, i32
  }
  func.func @transform_8(%arg0: i32) -> (i32, i32) {
    %c0_i32 = arith.constant 0 : i32
    %c0_i32_0 = arith.constant 0 : i32
    return %arg0, %c0_i32 : i32, i32
  }
  func.func @transform_9(%arg0: i32) -> (i32, i32) {
    %c0_i32 = arith.constant 0 : i32
    %c0_i32_0 = arith.constant 0 : i32
    %c0_i32_1 = arith.constant 0 : i32
    return %c0_i32, %c0_i32_0 : i32, i32
  }
}

</mosaic_0001>

<llo_original>
// kernel: tpu_custom_call.1
$region0: #{tpu_custom_call.1}
  #allocation0 [shape = 'u32[]', space=smem, size = 0x4, offset = 0x4, fixed_abs, tag = 'smem constant byte address 0x4 - core index']
  #allocation1 [shape = 'u32[144,128]{1,0:T(1,128)}', space=vmem, size = 0x12000, scoped, tag = 'internal scratch']
  %s0 = inlined_call_operand.hbm [shape: bf16[16,64], index: 0, kind: input, shape index: {}]
  %s1 = inlined_call_operand.hbm [shape: bf16[64,64], index: 1, kind: input, shape index: {}]
  %s2 = inlined_call_operand.vmem [shape: f32[1,64], index: 2, kind: input, shape index: {}]
  %s3 = inlined_call_operand.vmem [shape: f32[1,64], index: 3, kind: input, shape index: {}]
  %s4 = inlined_call_operand.vmem [shape: f32[1,64], index: 4, kind: input, shape index: {}]
  %s5 = inlined_call_operand.vmem [shape: f32[2,64], index: 5, kind: input, shape index: {}]
  %s6 = inlined_call_operand.vmem [shape: f32[2,64], index: 6, kind: input, shape index: {}]
  %s7 = inlined_call_operand.vmem [shape: f32[1,2], index: 7, kind: input, shape index: {}]
  %s8 = inlined_call_operand.hbm [shape: bf16[16,64], index: 8, kind: output, shape index: {0}]
  %s9 = inlined_call_operand.hbm [shape: f32[2,2], index: 9, kind: output, shape index: {1}]
  %10 = xla_tuple %s8, %s9
  %s11 = sld [smem:[#allocation0]]
  $region58: #{tpu_custom_call.1} parent=0
    _
  %s13 = ssub.s32 1, %s11
  %s14 = scalar_select 0, %s13, %s11
  $region1: #{tpu_custom_call.1} parent=0
    #allocation2 [shape = 'u8[4096]{0}', space=vmem, size = 0x1000, scoped, tag = 'input window, operand 0, single buffered']
    #allocation3 [shape = 's32[1]{0}', space=sflag, size = 0x4, scoped, tag = 'scoped memory for tpu_custom_call.1']
    #allocation4 [shape = 's32[1]{0}', space=sflag, size = 0x4, scoped, tag = 'scoped memory for tpu_custom_call.1']
    #allocation5 [shape = 'u8[16384]{0}', space=vmem, size = 0x4000, scoped, tag = 'input window, operand 1, single buffered']
    #allocation6 [shape = 's32[1]{0}', space=sflag, size = 0x4, scoped, tag = 'scoped memory for tpu_custom_call.1']
    #allocation7 [shape = 'u8[4096]{0}', space=vmem, size = 0x1000, scoped, tag = 'output window, operand 0, single buffered']
    #allocation8 [shape = 'u8[1024]{0}', space=vmem, size = 0x400, scoped, tag = 'output window, operand 1, single buffered']
    #allocation9 [shape = 's32[1]{0}', space=sflag, size = 0x4, scoped, tag = 'scoped memory for tpu_custom_call.1']
    %15 = vsyncpa [#allocation3], 0
    %16 = vsyncpa [#allocation6], 0
    %17 = vsyncpa [#allocation4], 0
    %18 = vsyncpa [#allocation9], 0
    // Predicated region
    $region2: #{tpu_custom_call.1} parent=1 // pred_check
      _
    $region3: #{tpu_custom_call.1} parent=1 // pred_check_branch
      %20 = sbr.rel (0) target = $region5
    $region4: #{tpu_custom_call.1} parent=1 // pred_region
      %s22 = ssub.s32 128, 128
      %23 = vsyncadd [#allocation3], %s22
      %s24 = sshll.u32 [#allocation2], 4
      %s25 = int_to_ptr.vmem [resolvable:$true] %s24
      %30 = dma.hbm_to_vmem [thread:$0]  %s0, 128, %s25, [#allocation3], 64, 64, 4
    $region5: #{tpu_custom_call.1} parent=1 // pred_fallthru
      _
    // Predicated region
    $region6: #{tpu_custom_call.1} parent=1 // pred_check
      _
    $region7: #{tpu_custom_call.1} parent=1 // pred_check_branch
      %32 = sbr.rel (0) target = $region9
    $region8: #{tpu_custom_call.1} parent=1 // pred_region
      %s34 = ssub.s32 512, 512
      %35 = vsyncadd [#allocation6], %s34
      %s36 = sshll.u32 [#allocation5], 4
      %s37 = int_to_ptr.vmem [resolvable:$true] %s36
      %42 = dma.hbm_to_vmem [thread:$0]  %s1, 512, %s37, [#allocation6], 64, 64, 4
    $region9: #{tpu_custom_call.1} parent=1 // pred_fallthru
      _
    // Predicated region
    $region10: #{tpu_custom_call.1} parent=1 // pred_check
      _
    $region11: #{tpu_custom_call.1} parent=1 // pred_check_branch
      %44 = sbr.rel (0) target = $region13
    $region12: #{tpu_custom_call.1} parent=1 // pred_region
      _
    $region13: #{tpu_custom_call.1} parent=1 // pred_fallthru
      _
    // Predicated region
    $region14: #{tpu_custom_call.1} parent=1 // pred_check
      _
    $region15: #{tpu_custom_call.1} parent=1 // pred_check_branch
      %46 = sbr.rel (0) target = $region17
    $region16: #{tpu_custom_call.1} parent=1 // pred_region
      _
    $region17: #{tpu_custom_call.1} parent=1 // pred_fallthru
      _
    // Predicated region
    $region18: #{tpu_custom_call.1} parent=1 // pred_check
      _
    $region19: #{tpu_custom_call.1} parent=1 // pred_check_branch
      %48 = sbr.rel (0) target = $region21
    $region20: #{tpu_custom_call.1} parent=1 // pred_region
      _
    $region21: #{tpu_custom_call.1} parent=1 // pred_fallthru
      _
    // Predicated region
    $region22: #{tpu_custom_call.1} parent=1 // pred_check
      _
    $region23: #{tpu_custom_call.1} parent=1 // pred_check_branch
      %50 = sbr.rel (0) target = $region25
    $region24: #{tpu_custom_call.1} parent=1 // pred_region
      _
    $region25: #{tpu_custom_call.1} parent=1 // pred_fallthru
      _
    // Predicated region
    $region26: #{tpu_custom_call.1} parent=1 // pred_check
      _
    $region27: #{tpu_custom_call.1} parent=1 // pred_check_branch
      %52 = sbr.rel (0) target = $region29
    $region28: #{tpu_custom_call.1} parent=1 // pred_region
      _
    $region29: #{tpu_custom_call.1} parent=1 // pred_fallthru
      _
    // Predicated region
    $region30: #{tpu_custom_call.1} parent=1 // pred_check
      _
    $region31: #{tpu_custom_call.1} parent=1 // pred_check_branch
      %54 = sbr.rel (0) target = $region33
    $region32: #{tpu_custom_call.1} parent=1 // pred_region
      _
    $region33: #{tpu_custom_call.1} parent=1 // pred_fallthru
      _
    // Predicated region
    $region34: #{tpu_custom_call.1} parent=1 // pred_check
      _
    $region35: #{tpu_custom_call.1} parent=1 // pred_check_branch
      %56 = sbr.rel (0) target = $region37
    $region36: #{tpu_custom_call.1} parent=1 // pred_region
      %57 = dma.done [#allocation3], 128
    $region37: #{tpu_custom_call.1} parent=1 // pred_fallthru
      _
    // Predicated region
    $region38: #{tpu_custom_call.1} parent=1 // pred_check
      _
    $region39: #{tpu_custom_call.1} parent=1 // pred_check_branch
      %59 = sbr.rel (0) target = $region41
    $region40: #{tpu_custom_call.1} parent=1 // pred_region
      %60 = dma.done [#allocation6], 512
    $region41: #{tpu_custom_call.1} parent=1 // pred_fallthru
      _
    %v62 = vld [vmem:[#allocation2] sm:$0xf]
    %v63 = vld [vmem:[#allocation2 + $0x4] sm:$0xf]
    %v64 = vld [vmem:[#allocation5] sm:$0xf]
    %v65 = vld [vmem:[#allocation5 + $0x4] sm:$0xf]
    %v66 = vld [vmem:[#allocation5 + $0x8] sm:$0xf]
    %v67 = vld [vmem:[#allocation5 + $0xc] sm:$0xf]
    %v68 = vld [vmem:[#allocation5 + $0x10] sm:$0xf]
    %v69 = vld [vmem:[#allocation5 + $0x14] sm:$0xf]
    %v70 = vld [vmem:[#allocation5 + $0x18] sm:$0xf]
    %v71 = vld [vmem:[#allocation5 + $0x1c] sm:$0xf]
    %v72 = vld [vmem:[%s2] sm:$0x1]
    %v74 = vlaneseq
    %v75 = vshrl.u32 %v74, 7
    %v76 = vsub.s32 0, %v75
    %v77 = vrot.slane %v72, %v76
    %v81 = vunpack.c.l.b16 %v62
    %v82 = vunpack.c.l.b16 %v63
    %v83 = vpack.c.b16 %v82, %v81
    %v92 = vunpack.c.l.b16 %v64
    %v93 = vunpack.c.l.b16 %v65
    %v94 = vunpack.c.l.b16 %v66
    %v95 = vunpack.c.l.b16 %v67
    %v96 = vunpack.c.l.b16 %v68
    %v97 = vunpack.c.l.b16 %v69
    %v98 = vunpack.c.l.b16 %v70
    %v99 = vunpack.c.l.b16 %v71
    %v100 = vpack.c.b16 %v93, %v92
    %v101 = vpack.c.b16 %v95, %v94
    %v102 = vpack.c.b16 %v97, %v96
    %v103 = vpack.c.b16 %v99, %v98
    %vm104 = vcmask 523264
    %v106 = vsel %vm104, %v83, 0
    %v109 = vsel %vm104, %v100, 0
    %v112 = vsel %vm104, %v101, 0
    %v115 = vsel %vm104, %v102, 0
    %v118 = vsel %vm104, %v103, 0
    %120 = vmatprep.subr.bf16.mxu0 0
    %121 = vmatpush1.bf16.xpose.msra.mxu0 %v109
    %122 = vmatprep.subr.bf16.mxu0 0
    %123 = vmatpush1.bf16.xpose.msra.mxu0 %v112
    %124 = vmatprep.subr.bf16.mxu0 0
    %125 = vmatpush1.bf16.xpose.msra.mxu0 %v115
    %126 = vmatprep.subr.bf16.mxu0 0
    %127 = vmatpush1.bf16.xpose.msra.mxu0 %v118
    %128 = vmatprep.subr.bf16.mxu0 0
    %129 = vmatpush1.bf16.xpose.msra.mxu0 0
    %130 = vmatprep.subr.bf16.mxu0 0
    %131 = vmatpush1.bf16.xpose.msra.mxu0 0
    %132 = vmatprep.subr.bf16.mxu0 0
    %133 = vmatpush1.bf16.xpose.msra.mxu0 0
    %134 = vmatprep.subr.bf16.mxu0 0
    %135 = vmatpush1.bf16.xpose.msra.mxu0 0
    %136 = vmatprep.subr.bf16.mxu0 0
    %137 = vmatpush1.bf16.xpose.msra.mxu0 0
    %138 = vmatprep.subr.bf16.mxu0 0
    %139 = vmatpush1.bf16.xpose.msra.mxu0 0
    %140 = vmatprep.subr.bf16.mxu0 0
    %141 = vmatpush1.bf16.xpose.msra.mxu0 0
    %142 = vmatprep.subr.bf16.mxu0 0
    %143 = vmatpush1.bf16.xpose.msra.mxu0 0
    %144 = vmatprep.subr.bf16.mxu0 0
    %145 = vmatpush1.bf16.xpose.msra.mxu0 0
    %146 = vmatprep.subr.bf16.mxu0 0
    %147 = vmatpush1.bf16.xpose.msra.mxu0 0
    %148 = vmatprep.subr.bf16.mxu0 0
    %149 = vmatpush1.bf16.xpose.msra.mxu0 0
    %150 = vmatprep.subr.bf16.mxu0 0
    %151 = vmatpush1.bf16.xpose.msra.mxu0 0
    %152 = vmatprep.mubr.bf16.mxu0 0
    %153 = vmatmul.mubr.bf16.gmra.mrb[0].mxu0 %v106
    %v154 = vpop.f32.mrb[0].mxu0
    %v155 = vadd.f32 %v77, %v154
    %v156 = vpop.f32.mrb[0].mxu0
    %v157 = vpop.f32.mrb[0].mxu0
    %v158 = vadd.f32 %v77, %v157
    %v159 = vpop.f32.mrb[0].mxu0
    %160 = vdwg.mxu0
    %v161 = vmul.f32 %v155, 0.5
    %v162 = vmul.f32 %v158, 0.5
    %v163 = vmul.f32 %v155, 0.044715
    %v164 = vmul.f32 %v158, 0.044715
    %v165 = vmul.f32 %v163, %v155
    %v166 = vmul.f32 %v164, %v158
    %v167 = vmul.f32 %v165, %v155
    %v168 = vmul.f32 %v166, %v158
    %v169 = vadd.f32 %v155, %v167
    %v170 = vadd.f32 %v158, %v168
    %v171 = vmul.f32 %v169, 0.7978845
    %v172 = vmul.f32 %v170, 0.7978845
    %v173 = vtanh.pop %v171
    %v174 = vtanh.pop %v172
    %v175 = vadd.f32 %v173, 1.0
    %v176 = vadd.f32 %v174, 1.0
    %v177 = vmul.f32 %v161, %v175
    %v178 = vmul.f32 %v162, %v176
    %v179 = vsel %vm104, %v177, 0.0
    %180 = vadd.xlane.f32.xlu0 %v179
    %v181 = vpop.xlane.xlu0 %180
    %v182 = vsel %vm104, %v178, 0.0
    %183 = vadd.xlane.f32.xlu0 %v182
    %v184 = vpop.xlane.xlu0 %183
    %v185 = vrcp.pop 64.0
    %v186 = vmul.f32 %v181, %v185
    %v187 = vmul.f32 %v184, %v185
    %v188 = vsub.f32 %v177, %v186
    %v189 = vsub.f32 %v178, %v187
    %v190 = vmul.f32 %v188, %v188
    %v191 = vmul.f32 %v189, %v189
    %v192 = vsel %vm104, %v190, 0.0
    %193 = vadd.xlane.f32.xlu0 %v192
    %v194 = vpop.xlane.xlu0 %193
    %v195 = vsel %vm104, %v191, 0.0
    %196 = vadd.xlane.f32.xlu0 %v195
    %v197 = vpop.xlane.xlu0 %196
    %v198 = vmul.f32 %v194, %v185
    %v199 = vmul.f32 %v197, %v185
    %v200 = vadd.f32 %v198, 1e-12
    %v201 = vadd.f32 %v199, 1e-12
    %v202 = vrsqrt.pop %v200
    %v203 = vrsqrt.pop %v201
    %v204 = vmul.f32 %v188, %v202
    %v205 = vmul.f32 %v189, %v203
    %v206 = vld [vmem:[%s3] sm:$0x1]
    %v208 = vlaneseq
    %v209 = vshrl.u32 %v208, 7
    %v210 = vsub.s32 0, %v209
    %v211 = vrot.slane %v206, %v210
    %v213 = vmul.f32 %v204, %v211
    %v214 = vmul.f32 %v205, %v211
    %v215 = vld [vmem:[%s4] sm:$0x1]
    %v217 = vlaneseq
    %v218 = vshrl.u32 %v217, 7
    %v219 = vsub.s32 0, %v218
    %v220 = vrot.slane %v215, %v219
    %v222 = vadd.f32 %v213, %v220
    %v223 = vadd.f32 %v214, %v220
    %v224 = vpack.c.bf16 %v223, %v222
    %v226 = vunpack.c.l.b16 %v224
    %v227 = vunpack.c.h.b16 %v224
    %v228 = vpack.c.b16 %v226, %v226
    %v229 = vpack.c.b16 %v227, %v227
    %vm232 = vcmask 519168
    %233 = vst.msk [vmem:[#allocation7] sm:$0xf] %vm232, %v228
    %234 = vst.msk [vmem:[#allocation7 + $0x4] sm:$0xf] %vm232, %v229
    %v235 = vld [vmem:[%s5] sm:$0x3]
    %v236 = vld [vmem:[%s6] sm:$0x3]
    %v237 = vld [vmem:[%s7] sm:$0x1]
    %v239 = vlaneseq
    %v240 = vshrl.u32 %v239, 7
    %v241 = vsub.s32 0, %v240
    %v242 = vrot.slane %v237, %v241
    %v245 = vsel %vm104, %v235, 0
    %v248 = vsel %vm104, %v236, 0
    %250 = vmatprep.subr.mxu0 0.0
    %251 = vmatpush1.xpose.msra.mxu0 %v248
    %252 = vmatprep.subr.mxu0 0.0
    %253 = vmatpush1.xpose.msra.mxu0 0.0
    %254 = vmatprep.subr.mxu0 0.0
    %255 = vmatpush1.xpose.msra.mxu0 0.0
    %256 = vmatprep.subr.mxu0 0.0
    %257 = vmatpush1.xpose.msra.mxu0 0.0
    %258 = vmatprep.subr.mxu0 0.0
    %259 = vmatpush1.xpose.msra.mxu0 0.0
    %260 = vmatprep.subr.mxu0 0.0
    %261 = vmatpush1.xpose.msra.mxu0 0.0
    %262 = vmatprep.subr.mxu0 0.0
    %263 = vmatpush1.xpose.msra.mxu0 0.0
    %264 = vmatprep.subr.mxu0 0.0
    %265 = vmatpush1.xpose.msra.mxu0 0.0
    %266 = vmatprep.subr.mxu0 0.0
    %267 = vmatpush1.xpose.msra.mxu0 0.0
    %268 = vmatprep.subr.mxu0 0.0
    %269 = vmatpush1.xpose.msra.mxu0 0.0
    %270 = vmatprep.subr.mxu0 0.0
    %271 = vmatpush1.xpose.msra.mxu0 0.0
    %272 = vmatprep.subr.mxu0 0.0
    %273 = vmatpush1.xpose.msra.mxu0 0.0
    %274 = vmatprep.subr.mxu0 0.0
    %275 = vmatpush1.xpose.msra.mxu0 0.0
    %276 = vmatprep.subr.mxu0 0.0
    %277 = vmatpush1.xpose.msra.mxu0 0.0
    %278 = vmatprep.subr.mxu0 0.0
    %279 = vmatpush1.xpose.msra.mxu0 0.0
    %280 = vmatprep.subr.mxu0 0.0
    %281 = vmatpush1.xpose.msra.mxu0 0.0
    %282 = vmatprep.subr.mxu0 0.0
    %283 = vmatpush1.xpose.msra.mxu0 0.0
    %284 = vmatprep.subr.mxu0 0.0
    %285 = vmatpush1.xpose.msra.mxu0 0.0
    %286 = vmatprep.subr.mxu0 0.0
    %287 = vmatpush1.xpose.msra.mxu0 0.0
    %288 = vmatprep.subr.mxu0 0.0
    %289 = vmatpush1.xpose.msra.mxu0 0.0
    %290 = vmatprep.subr.mxu0 0.0
    %291 = vmatpush1.xpose.msra.mxu0 0.0
    %292 = vmatprep.subr.mxu0 0.0
    %293 = vmatpush1.xpose.msra.mxu0 0.0
    %294 = vmatprep.subr.mxu0 0.0
    %295 = vmatpush1.xpose.msra.mxu0 0.0
    %296 = vmatprep.subr.mxu0 0.0
    %297 = vmatpush1.xpose.msra.mxu0 0.0
    %298 = vmatprep.subr.mxu0 0.0
    %299 = vmatpush1.xpose.msra.mxu0 0.0
    %300 = vmatprep.subr.mxu0 0.0
    %301 = vmatpush1.xpose.msra.mxu0 0.0
    %302 = vmatprep.subr.mxu0 0.0
    %303 = vmatpush1.xpose.msra.mxu0 0.0
    %304 = vmatprep.subr.mxu0 0.0
    %305 = vmatpush1.xpose.msra.mxu0 0.0
    %306 = vmatprep.subr.mxu0 0.0
    %307 = vmatpush1.xpose.msra.mxu0 0.0
    %308 = vmatprep.subr.mxu0 0.0
    %309 = vmatpush1.xpose.msra.mxu0 0.0
    %310 = vmatprep.subr.mxu0 0.0
    %311 = vmatpush1.xpose.msra.mxu0 0.0
    %312 = vmatprep.subr.mxu0 0.0
    %313 = vmatpush1.xpose.msra.mxu0 0.0
    %314 = vmatprep.mubr.f32.mxu0 0.0
    %315 = vmatmul.mubr.f32.gmra.mrb[0].mxu0 %v245
    %v316 = vpop.f32.mrb[0].mxu0
    %v317 = vadd.f32 %v242, %v316
    %v318 = vpop.f32.mrb[0].mxu0
    %319 = vdwg.mxu0
    %vm320 = vcmask 9216
    %321 = vst.msk [vmem:[#allocation8] sm:$0x3] %vm320, %v317
    // Predicated region
    $region42: #{tpu_custom_call.1} parent=1 // pred_check
      _
    $region43: #{tpu_custom_call.1} parent=1 // pred_check_branch
      %323 = sbr.rel (0) target = $region45
    $region44: #{tpu_custom_call.1} parent=1 // pred_region
      %s325 = ssub.s32 128, 128
      %326 = vsyncadd [#allocation4], %s325
      %s327 = sshll.u32 [#allocation7], 4
      %s328 = int_to_ptr.vmem [resolvable:$true] %s327
      %333 = dma.vmem_to_hbm [thread:$0]  %s328, 128, %s8, [#allocation4], 64, 64, 4
    $region45: #{tpu_custom_call.1} parent=1 // pred_fallthru
      _
    // Predicated region
    $region46: #{tpu_custom_call.1} parent=1 // pred_check
      _
    $region47: #{tpu_custom_call.1} parent=1 // pred_check_branch
      %335 = sbr.rel (0) target = $region49
    $region48: #{tpu_custom_call.1} parent=1 // pred_region
      %s337 = ssub.s32 32, 32
      %338 = vsyncadd [#allocation9], %s337
      %s340 = sshll.u32 [#allocation8], 4
      %s341 = int_to_ptr.vmem [resolvable:$true] %s340
      %343 = dma.vmem_to_hbm [thread:$0]  %s341, 32, %s9, [#allocation9]
    $region49: #{tpu_custom_call.1} parent=1 // pred_fallthru
      _
    // Predicated region
    $region50: #{tpu_custom_call.1} parent=1 // pred_check
      _
    $region51: #{tpu_custom_call.1} parent=1 // pred_check_branch
      %345 = sbr.rel (0) target = $region53
    $region52: #{tpu_custom_call.1} parent=1 // pred_region
      %346 = dma.done [#allocation4], 128
    $region53: #{tpu_custom_call.1} parent=1 // pred_fallthru
      _
    // Predicated region
    $region54: #{tpu_custom_call.1} parent=1 // pred_check
      _
    $region55: #{tpu_custom_call.1} parent=1 // pred_check_branch
      %348 = sbr.rel (0) target = $region57
    $region56: #{tpu_custom_call.1} parent=1 // pred_region
      %349 = dma.done [#allocation9], 32
    $region57: #{tpu_custom_call.1} parent=1 // pred_fallthru
      _
    %350 = vsyncpa [#allocation3], 1
    %351 = vsyncpa [#allocation6], 1
    %352 = vsyncpa [#allocation4], 1
    %353 = vsyncpa [#allocation9], 1

</llo_original>
